<compile_context>
chip_gen: v5e
topology: v5e:2x2
jax: 0.10.0
libtpu: 0.0.40
codegen_flags: <defaults>
</compile_context>

<pallas_src>
import math

import jax
import jax.numpy as jnp
from jax.experimental import pallas as pl
from jax.experimental.pallas import tpu as pltpu

PI = 3.141592653589793
_TWO_PI = 2.0 * PI

# 5-term Taylor coefficients of sin(2*pi*t) / cos(2*pi*t) as polynomials in t
# (2*pi folded into the coefficients).  Valid on |t| <= 0.25 after range
# reduction: truncation error < ~3e-6 (sin), < ~2.5e-5 (cos) -- far inside the
# accuracy that matters for a positional encoding, and one mul+add per element
# cheaper on the binding VALU slots (no f32 FMA on the VPU).
_S = tuple(((-1.0) ** k) * _TWO_PI ** (2 * k + 1) / math.factorial(2 * k + 1)
           for k in range(5))
_C = tuple(((-1.0) ** k) * _TWO_PI ** (2 * k) / math.factorial(2 * k)
           for k in range(5))


def _posenc_kernel(x_ref, w_ref, out_ref):
    # x_ref: (tm, D+1)  -- last column is ones (bias folded into the matmul)
    # w_ref: (D+1, F)   -- last row is the bias
    # out_ref: (tm, 2F)
    f = w_ref.shape[1]

    # u = [x, 1] @ [W^T ; b]   (K is tiny; the MXU matmul is noise, f32 accum)
    u = jnp.dot(x_ref[...], w_ref[...], preferred_element_type=jnp.float32)

    # sin/cos(2*pi*u) has period 1 in u:
    #   k = round(2u)  ->  t = u - k/2 in [-0.25, 0.25],  overall sign = (-1)^k
    kf = jnp.floor(u + u + 0.5)              # round-half-up, stays on the VPU
    t = u - 0.5 * kf

    # Shared even powers; both polynomials run on the 4-wide VALU slots,
    # leaving the single EUP slot completely free.
    t2 = t * t
    sin_p = _S[0] + t2 * (_S[1] + t2 * (_S[2] + t2 * (_S[3] + t2 * _S[4])))
    sin_p = t * sin_p
    cos_p = _C[0] + t2 * (_C[1] + t2 * (_C[2] + t2 * (_C[3] + t2 * _C[4])))

    # (-1)^k via the float sign bit: parity of k lands in bit 31 after << 31,
    # XOR flips the sign of both polynomials.  Bitcasts are free; this replaces
    # the arithmetic parity/sign/two-multiply chain (~6 VALU ops/element).
    # NOTE: int32 cast of k is exact only for |2u| < 2^31, and the f32 range
    # reduction itself assumes moderate |u| (fine for unit-normal x and W).
    sbit = kf.astype(jnp.int32) << 31
    cos_v = pltpu.bitcast(pltpu.bitcast(cos_p, jnp.int32) ^ sbit, jnp.float32)
    sin_v = pltpu.bitcast(pltpu.bitcast(sin_p, jnp.int32) ^ sbit, jnp.float32)

    # Tail rows of a partial last block hold garbage but their stores are
    # masked by Pallas -- do NOT add any cross-row reduction over this tile.
    out_ref[:, :f] = cos_v.astype(out_ref.dtype)   # cos half: lanes [0, F)
    out_ref[:, f:] = sin_v.astype(out_ref.dtype)   # sin half: lanes [F, 2F)


def _round_up(v, m):
    return ((v + m - 1) // m) * m


def positional_encoding(x, weight, bias, *, tm_max=1024, out_dtype=None):
    """PositionalEncoding forward pass.

    x: (N, D); weight: (F, D) torch nn.Linear layout; bias: (F,).
    Returns concat(cos(2*pi*(x@W^T+b)), sin(2*pi*(x@W^T+b))), shape (N, 2F).

    out_dtype: pass jnp.bfloat16 to halve the output writeback (the dominant
    HBM traffic; ~2x on v5e).  All in-kernel math stays f32 regardless.
    On v5e with very large N, tm_max can be raised to 2048-4096 for longer
    writeback bursts; keep the default on v7x so the grid keeps >= 2 steps.
    """
    n, d = x.shape
    f = weight.shape[0]
    out_dtype = x.dtype if out_dtype is None else jnp.dtype(out_dtype)

    # Keep both output halves lane-aligned: pad F to a multiple of 128 so the
    # sin half starts on a 128-lane boundary (avoids lane-shifted vst.msk).
    f_pad = _round_up(f, 128)
    if f_pad != f:
        weight = jnp.pad(weight, ((0, f_pad - f), (0, 0)))
        bias = jnp.pad(bias, (0, f_pad - f))

    # Fold the bias into the matmul: augmented weight [W^T ; b], ones column
    # appended to x (K goes D -> D+1; the extra MXU work is free).
    w_aug = jnp.concatenate([weight.T, bias.reshape(1, f_pad)], axis=0)   # (D+1, F)
    x_aug = jnp.concatenate([x, jnp.ones((n, 1), dtype=x.dtype)], axis=1)  # (N, D+1)

    # Row tile: big enough to amortize the ~0.35us/step overhead, but sized so
    # the grid has >= 2 steps whenever N allows it -- with ("parallel",) the
    # row axis is then sharded across both TensorCores on v7x.
    tm_max = max(8, (int(tm_max) // 8) * 8)
    tm = min(tm_max, max(256, _round_up(pl.cdiv(n, 2), 8)), _round_up(n, 8))
    grid = (pl.cdiv(n, tm),)                 # partial last block masked by Pallas

    out_bytes = 2 * f_pad * jnp.dtype(out_dtype).itemsize
    cost = pl.CostEstimate(
        flops=2 * n * f_pad * (d + 1) + 26 * n * f_pad,   # matmul + VPU polys
        transcendentals=0,                                # no EUP sin/cos
        bytes_accessed=n * (d + 1) * x.dtype.itemsize
        + n * out_bytes
        + (d + 1) * f_pad * weight.dtype.itemsize,
    )

    out = pl.pallas_call(
        _posenc_kernel,
        out_shape=jax.ShapeDtypeStruct((n, 2 * f_pad), out_dtype),
        grid_spec=pltpu.PrefetchScalarGridSpec(
            num_scalar_prefetch=0,
            grid=grid,
            in_specs=[
                pl.BlockSpec((tm, d + 1), lambda i: (i, 0)),     # x row tile
                pl.BlockSpec((d + 1, f_pad), lambda i: (0, 0)),  # resident weight
            ],
            out_specs=pl.BlockSpec((tm, 2 * f_pad), lambda i: (i, 0)),
        ),
        compiler_params=pltpu.CompilerParams(
            dimension_semantics=("parallel",),
        ),
        cost_estimate=cost,
    )(x_aug, w_aug)

    if f_pad != f:
        # TODO(synk): avoid this extra repack pass when F is not a multiple of 128.
        out = jnp.concatenate([out[:, :f], out[:, f_pad:f_pad + f]], axis=1)
    return out


def _reference(x, weight, bias):
    z = _TWO_PI * (x @ weight.T + bias)
    return jnp.concatenate([jnp.cos(z), jnp.sin(z)], axis=1)


if __name__ == "__main__":
    # Small, module-consistent shapes: point coordinates -> frequencies.
    N = 256                # number of points (rows)
    in_features = 8        # coordinate dimension
    num_frequencies = 128  # -> out_features = 256
    std = 1.0

    key = jax.random.PRNGKey(0)
    kx, kw, kx2 = jax.random.split(key, 3)

    x = jax.random.normal(kx, (N, in_features), dtype=jnp.float32)
    # Deterministic init matching nn.init.normal_(weight, 0, std), zeros bias.
    weight = std * jax.random.normal(kw, (num_frequencies, in_features),
                                     dtype=jnp.float32)
    bias = jnp.zeros((num_frequencies,), dtype=jnp.float32)

    out = positional_encoding(x, weight, bias)
    out = jax.block_until_ready(out)

    ref = _reference(x, weight, bias)
    assert out.shape == (N, 2 * num_frequencies)
    assert jnp.allclose(out, ref, atol=1e-4, rtol=1e-4), \
        float(jnp.max(jnp.abs(out - ref)))

    # Ragged N (not a multiple of the row tile) exercises the cdiv grid, the
    # masked partial last block, and a >=2-step grid (both TCs on v7x).
    N2 = 200
    x2 = jax.random.normal(kx2, (N2, in_features), dtype=jnp.float32)
    out2 = jax.block_until_ready(positional_encoding(x2, weight, bias, tm_max=128))
    ref2 = _reference(x2, weight, bias)
    assert out2.shape == (N2, 2 * num_frequencies)
    assert jnp.allclose(out2, ref2, atol=1e-4, rtol=1e-4)

    print("KERNEL_OK")
</pallas_src>

<mosaic_0001>
module attributes {stable_mosaic.version = 11 : i64} {
  func.func @_posenc_kernel(%arg0: i32, %arg1: memref<256x9xf32, #tpu.memory_space<vmem>>, %arg2: memref<9x128xf32, #tpu.memory_space<vmem>>, %arg3: memref<256x256xf32, #tpu.memory_space<vmem>>) attributes {dimension_semantics = [#tpu.dimension_semantics<parallel>], iteration_bounds = array<i64: 1>, scalar_prefetch = 0 : i64, scratch_operands = 0 : i64, tpu.core_type = #tpu.core_type<tc>, window_params = [{transform_indices = @transform_0, window_bounds = array<i64: 256, 9>}, {pipeline_mode = #tpu.pipeline_mode<synchronous>, transform_indices = @transform_1, window_bounds = array<i64: 9, 128>}, {transform_indices = @transform_2, window_bounds = array<i64: 256, 256>}]} {
    %c0 = arith.constant 0 : index
    %c0_0 = arith.constant 0 : index
    %0 = vector.load %arg1[%c0, %c0_0] : memref<256x9xf32, #tpu.memory_space<vmem>>, vector<256x9xf32>
    %c0_1 = arith.constant 0 : index
    %c0_2 = arith.constant 0 : index
    %1 = vector.load %arg2[%c0_1, %c0_2] : memref<9x128xf32, #tpu.memory_space<vmem>>, vector<9x128xf32>
    %cst = arith.constant dense<0.000000e+00> : vector<256x128xf32>
    %2 = tpu.matmul %0, %1, %cst {dimension_numbers = #tpu.dot_dimension_numbers<[1], [0], [0], [1], [0, 0, 1, 1], [], []>} : vector<256x9xf32>, vector<9x128xf32>, vector<256x128xf32> -> vector<256x128xf32>
    %3 = arith.addf %2, %2 : vector<256x128xf32>
    %cst_3 = arith.constant 5.000000e-01 : f32
    %4 = vector.broadcast %cst_3 : f32 to vector<256x128xf32>
    %5 = arith.addf %3, %4 : vector<256x128xf32>
    %6 = math.floor %5 : vector<256x128xf32>
    %cst_4 = arith.constant 5.000000e-01 : f32
    %7 = vector.broadcast %cst_4 : f32 to vector<256x128xf32>
    %8 = arith.mulf %7, %6 : vector<256x128xf32>
    %9 = arith.subf %2, %8 : vector<256x128xf32>
    %10 = arith.mulf %9, %9 : vector<256x128xf32>
    %cst_5 = arith.constant 42.0586929 : f32
    %11 = vector.broadcast %cst_5 : f32 to vector<256x128xf32>
    %12 = arith.mulf %10, %11 : vector<256x128xf32>
    %cst_6 = arith.constant -76.7058563 : f32
    %13 = vector.broadcast %cst_6 : f32 to vector<256x128xf32>
    %14 = arith.addf %13, %12 : vector<256x128xf32>
    %15 = arith.mulf %10, %14 : vector<256x128xf32>
    %cst_7 = arith.constant 81.6052475 : f32
    %16 = vector.broadcast %cst_7 : f32 to vector<256x128xf32>
    %17 = arith.addf %16, %15 : vector<256x128xf32>
    %18 = arith.mulf %10, %17 : vector<256x128xf32>
    %cst_8 = arith.constant -4.134170e+01 : f32
    %19 = vector.broadcast %cst_8 : f32 to vector<256x128xf32>
    %20 = arith.addf %19, %18 : vector<256x128xf32>
    %21 = arith.mulf %10, %20 : vector<256x128xf32>
    %cst_9 = arith.constant 6.28318548 : f32
    %22 = vector.broadcast %cst_9 : f32 to vector<256x128xf32>
    %23 = arith.addf %22, %21 : vector<256x128xf32>
    %24 = arith.mulf %9, %23 : vector<256x128xf32>
    %cst_10 = arith.constant 60.2446404 : f32
    %25 = vector.broadcast %cst_10 : f32 to vector<256x128xf32>
    %26 = arith.mulf %10, %25 : vector<256x128xf32>
    %cst_11 = arith.constant -85.4568176 : f32
    %27 = vector.broadcast %cst_11 : f32 to vector<256x128xf32>
    %28 = arith.addf %27, %26 : vector<256x128xf32>
    %29 = arith.mulf %10, %28 : vector<256x128xf32>
    %cst_12 = arith.constant 64.9393921 : f32
    %30 = vector.broadcast %cst_12 : f32 to vector<256x128xf32>
    %31 = arith.addf %30, %29 : vector<256x128xf32>
    %32 = arith.mulf %10, %31 : vector<256x128xf32>
    %cst_13 = arith.constant -19.7392082 : f32
    %33 = vector.broadcast %cst_13 : f32 to vector<256x128xf32>
    %34 = arith.addf %33, %32 : vector<256x128xf32>
    %35 = arith.mulf %10, %34 : vector<256x128xf32>
    %cst_14 = arith.constant 1.000000e+00 : f32
    %36 = vector.broadcast %cst_14 : f32 to vector<256x128xf32>
    %37 = arith.addf %36, %35 : vector<256x128xf32>
    %38 = arith.fptosi %6 : vector<256x128xf32> to vector<256x128xi32>
    %c31_i32 = arith.constant 31 : i32
    %39 = vector.broadcast %c31_i32 : i32 to vector<256x128xi32>
    %40 = arith.shli %38, %39 : vector<256x128xi32>
    %41 = tpu.bitcast %37 : vector<256x128xf32> -> vector<256x128xi32>
    %42 = arith.xori %41, %40 : vector<256x128xi32>
    %43 = tpu.bitcast %42 : vector<256x128xi32> -> vector<256x128xf32>
    %44 = tpu.bitcast %24 : vector<256x128xf32> -> vector<256x128xi32>
    %45 = arith.xori %44, %40 : vector<256x128xi32>
    %46 = tpu.bitcast %45 : vector<256x128xi32> -> vector<256x128xf32>
    %c0_15 = arith.constant 0 : index
    %c0_16 = arith.constant 0 : index
    %47 = vector.load %arg3[%c0_15, %c0_16] : memref<256x256xf32, #tpu.memory_space<vmem>>, vector<256x128xf32>
    tpu.vector_store %arg3[%c0_15, %c0_16], %43 {strides = array<i32>} : memref<256x256xf32, #tpu.memory_space<vmem>>, vector<256x128xf32>,
    %c0_17 = arith.constant 0 : index
    %c128 = arith.constant 128 : index
    %48 = vector.load %arg3[%c0_17, %c128] : memref<256x256xf32, #tpu.memory_space<vmem>>, vector<256x128xf32>
    tpu.vector_store %arg3[%c0_17, %c128], %46 {strides = array<i32>} : memref<256x256xf32, #tpu.memory_space<vmem>>, vector<256x128xf32>,
    return
  }
  func.func @transform_0(%arg0: i32) -> (i32, i32) {
    %c0_i32 = arith.constant 0 : i32
    %c0_i32_0 = arith.constant 0 : i32
    return %arg0, %c0_i32 : i32, i32
  }
  func.func @transform_1(%arg0: i32) -> (i32, i32) {
    %c0_i32 = arith.constant 0 : i32
    %c0_i32_0 = arith.constant 0 : i32
    %c0_i32_1 = arith.constant 0 : i32
    return %c0_i32, %c0_i32_0 : i32, i32
  }
  func.func @transform_2(%arg0: i32) -> (i32, i32) {
    %c0_i32 = arith.constant 0 : i32
    %c0_i32_0 = arith.constant 0 : i32
    return %arg0, %c0_i32 : i32, i32
  }
}

</mosaic_0001>

<llo_original>
// kernel: tpu_custom_call.1
$region0: #{tpu_custom_call.1}
  #allocation0 [shape = 'u32[]', space=smem, size = 0x4, offset = 0x4, fixed_abs, tag = 'smem constant byte address 0x4 - core index']
  #allocation1 [shape = 'u32[72,128]{1,0:T(1,128)}', space=vmem, size = 0x9000, scoped, tag = 'internal scratch']
  %s0 = inlined_call_operand.vmem [shape: f32[256,9], index: 0, kind: input, shape index: {}]
  %s1 = inlined_call_operand.vmem [shape: f32[9,128], index: 1, kind: input, shape index: {}]
  %s2 = inlined_call_operand.hbm [shape: f32[256,256], index: 2, kind: output, shape index: {}]
  %s3 = sld [smem:[#allocation0]]
  $region18: #{tpu_custom_call.1} parent=0
    _
  %s5 = ssub.s32 1, %s3
  %s6 = scalar_select 0, %s5, %s3
  $region1: #{tpu_custom_call.1} parent=0
    #allocation2 [shape = 'u8[262144]{0}', space=vmem, size = 0x40000, scoped, tag = 'output window, operand 0, single buffered']
    #allocation3 [shape = 's32[1]{0}', space=sflag, size = 0x4, scoped, tag = 'scoped memory for tpu_custom_call.1']
    %7 = vsyncpa [#allocation3], 0
    // Predicated region
    $region2: #{tpu_custom_call.1} parent=1 // pred_check
      _
    $region3: #{tpu_custom_call.1} parent=1 // pred_check_branch
      %9 = sbr.rel (0) target = $region5
    $region4: #{tpu_custom_call.1} parent=1 // pred_region
      _
    $region5: #{tpu_custom_call.1} parent=1 // pred_fallthru
      _
    // Predicated region
    $region6: #{tpu_custom_call.1} parent=1 // pred_check
      _
    $region7: #{tpu_custom_call.1} parent=1 // pred_check_branch
      %11 = sbr.rel (0) target = $region9
    $region8: #{tpu_custom_call.1} parent=1 // pred_region
      _
    $region9: #{tpu_custom_call.1} parent=1 // pred_fallthru
      _
    %v12 = vld [vmem:[%s0] sm:$0xff]
    %v13 = vld [vmem:[%s0 + $0x8] sm:$0xff]
    %v14 = vld [vmem:[%s0 + $0x10] sm:$0xff]
    %v15 = vld [vmem:[%s0 + $0x18] sm:$0xff]
    %v16 = vld [vmem:[%s0 + $0x20] sm:$0xff]
    %v17 = vld [vmem:[%s0 + $0x28] sm:$0xff]
    %v18 = vld [vmem:[%s0 + $0x30] sm:$0xff]
    %v19 = vld [vmem:[%s0 + $0x38] sm:$0xff]
    %v20 = vld [vmem:[%s0 + $0x40] sm:$0xff]
    %v21 = vld [vmem:[%s0 + $0x48] sm:$0xff]
    %v22 = vld [vmem:[%s0 + $0x50] sm:$0xff]
    %v23 = vld [vmem:[%s0 + $0x58] sm:$0xff]
    %v24 = vld [vmem:[%s0 + $0x60] sm:$0xff]
    %v25 = vld [vmem:[%s0 + $0x68] sm:$0xff]
    %v26 = vld [vmem:[%s0 + $0x70] sm:$0xff]
    %v27 = vld [vmem:[%s0 + $0x78] sm:$0xff]
    %v28 = vld [vmem:[%s0 + $0x80] sm:$0xff]
    %v29 = vld [vmem:[%s0 + $0x88] sm:$0xff]
    %v30 = vld [vmem:[%s0 + $0x90] sm:$0xff]
    %v31 = vld [vmem:[%s0 + $0x98] sm:$0xff]
    %v32 = vld [vmem:[%s0 + $0xa0] sm:$0xff]
    %v33 = vld [vmem:[%s0 + $0xa8] sm:$0xff]
    %v34 = vld [vmem:[%s0 + $0xb0] sm:$0xff]
    %v35 = vld [vmem:[%s0 + $0xb8] sm:$0xff]
    %v36 = vld [vmem:[%s0 + $0xc0] sm:$0xff]
    %v37 = vld [vmem:[%s0 + $0xc8] sm:$0xff]
    %v38 = vld [vmem:[%s0 + $0xd0] sm:$0xff]
    %v39 = vld [vmem:[%s0 + $0xd8] sm:$0xff]
    %v40 = vld [vmem:[%s0 + $0xe0] sm:$0xff]
    %v41 = vld [vmem:[%s0 + $0xe8] sm:$0xff]
    %v42 = vld [vmem:[%s0 + $0xf0] sm:$0xff]
    %v43 = vld [vmem:[%s0 + $0xf8] sm:$0xff]
    %v44 = vld [vmem:[%s1] sm:$0xff]
    %v45 = vld [vmem:[%s1 + $0x8] sm:$0x1]
    %vm46 = vcmask 72704
    %v48 = vsel %vm46, %v12, 0
    %v51 = vsel %vm46, %v13, 0
    %v54 = vsel %vm46, %v14, 0
    %v57 = vsel %vm46, %v15, 0
    %v60 = vsel %vm46, %v16, 0
    %v63 = vsel %vm46, %v17, 0
    %v66 = vsel %vm46, %v18, 0
    %v69 = vsel %vm46, %v19, 0
    %v72 = vsel %vm46, %v20, 0
    %v75 = vsel %vm46, %v21, 0
    %v78 = vsel %vm46, %v22, 0
    %v81 = vsel %vm46, %v23, 0
    %v84 = vsel %vm46, %v24, 0
    %v87 = vsel %vm46, %v25, 0
    %v90 = vsel %vm46, %v26, 0
    %v93 = vsel %vm46, %v27, 0
    %v96 = vsel %vm46, %v28, 0
    %v99 = vsel %vm46, %v29, 0
    %v102 = vsel %vm46, %v30, 0
    %v105 = vsel %vm46, %v31, 0
    %v108 = vsel %vm46, %v32, 0
    %v111 = vsel %vm46, %v33, 0
    %v114 = vsel %vm46, %v34, 0
    %v117 = vsel %vm46, %v35, 0
    %v120 = vsel %vm46, %v36, 0
    %v123 = vsel %vm46, %v37, 0
    %v126 = vsel %vm46, %v38, 0
    %v129 = vsel %vm46, %v39, 0
    %v132 = vsel %vm46, %v40, 0
    %v135 = vsel %vm46, %v41, 0
    %v138 = vsel %vm46, %v42, 0
    %v141 = vsel %vm46, %v43, 0
    %vm143 = vcmask 1040384
    %v145 = vsel %vm143, %v45, 0
    %147 = vmatpush.msra.mxu0 0.0
    %148 = vmatpush.msra.mxu0 0.0
    %149 = vmatpush.msra.mxu0 0.0
    %150 = vmatpush.msra.mxu0 0.0
    %151 = vmatpush.msra.mxu0 0.0
    %152 = vmatpush.msra.mxu0 0.0
    %153 = vmatpush.msra.mxu0 0.0
    %154 = vmatpush.msra.mxu0 0.0
    %155 = vmatpush.msra.mxu0 0.0
    %156 = vmatpush.msra.mxu0 0.0
    %157 = vmatpush.msra.mxu0 0.0
    %158 = vmatpush.msra.mxu0 0.0
    %159 = vmatpush.msra.mxu0 0.0
    %160 = vmatpush.msra.mxu0 0.0
    %161 = vmatpush.msra.mxu0 %v145
    %162 = vmatpush.msra.mxu0 %v44
    %163 = vmatmul.f32.gmra.mxu0 %v48
    %v164 = vpop.f32.mrf.mxu0
    %v165 = vadd.f32 0.0, %v164
    %166 = vmatmul.f32.gmra.mxu0 %v51
    %v167 = vpop.f32.mrf.mxu0
    %v168 = vadd.f32 0.0, %v167
    %169 = vmatmul.f32.gmra.mxu0 %v54
    %v170 = vpop.f32.mrf.mxu0
    %v171 = vadd.f32 0.0, %v170
    %172 = vmatmul.f32.gmra.mxu0 %v57
    %v173 = vpop.f32.mrf.mxu0
    %v174 = vadd.f32 0.0, %v173
    %175 = vmatmul.f32.gmra.mxu0 %v60
    %v176 = vpop.f32.mrf.mxu0
    %v177 = vadd.f32 0.0, %v176
    %178 = vmatmul.f32.gmra.mxu0 %v63
    %v179 = vpop.f32.mrf.mxu0
    %v180 = vadd.f32 0.0, %v179
    %181 = vmatmul.f32.gmra.mxu0 %v66
    %v182 = vpop.f32.mrf.mxu0
    %v183 = vadd.f32 0.0, %v182
    %184 = vmatmul.f32.gmra.mxu0 %v69
    %v185 = vpop.f32.mrf.mxu0
    %v186 = vadd.f32 0.0, %v185
    %187 = vmatmul.f32.gmra.mxu0 %v72
    %v188 = vpop.f32.mrf.mxu0
    %v189 = vadd.f32 0.0, %v188
    %190 = vmatmul.f32.gmra.mxu0 %v75
    %v191 = vpop.f32.mrf.mxu0
    %v192 = vadd.f32 0.0, %v191
    %193 = vmatmul.f32.gmra.mxu0 %v78
    %v194 = vpop.f32.mrf.mxu0
    %v195 = vadd.f32 0.0, %v194
    %196 = vmatmul.f32.gmra.mxu0 %v81
    %v197 = vpop.f32.mrf.mxu0
    %v198 = vadd.f32 0.0, %v197
    %199 = vmatmul.f32.gmra.mxu0 %v84
    %v200 = vpop.f32.mrf.mxu0
    %v201 = vadd.f32 0.0, %v200
    %202 = vmatmul.f32.gmra.mxu0 %v87
    %v203 = vpop.f32.mrf.mxu0
    %v204 = vadd.f32 0.0, %v203
    %205 = vmatmul.f32.gmra.mxu0 %v90
    %v206 = vpop.f32.mrf.mxu0
    %v207 = vadd.f32 0.0, %v206
    %208 = vmatmul.f32.gmra.mxu0 %v93
    %v209 = vpop.f32.mrf.mxu0
    %v210 = vadd.f32 0.0, %v209
    %211 = vmatmul.f32.gmra.mxu0 %v96
    %v212 = vpop.f32.mrf.mxu0
    %v213 = vadd.f32 0.0, %v212
    %214 = vmatmul.f32.gmra.mxu0 %v99
    %v215 = vpop.f32.mrf.mxu0
    %v216 = vadd.f32 0.0, %v215
    %217 = vmatmul.f32.gmra.mxu0 %v102
    %v218 = vpop.f32.mrf.mxu0
    %v219 = vadd.f32 0.0, %v218
    %220 = vmatmul.f32.gmra.mxu0 %v105
    %v221 = vpop.f32.mrf.mxu0
    %v222 = vadd.f32 0.0, %v221
    %223 = vmatmul.f32.gmra.mxu0 %v108
    %v224 = vpop.f32.mrf.mxu0
    %v225 = vadd.f32 0.0, %v224
    %226 = vmatmul.f32.gmra.mxu0 %v111
    %v227 = vpop.f32.mrf.mxu0
    %v228 = vadd.f32 0.0, %v227
    %229 = vmatmul.f32.gmra.mxu0 %v114
    %v230 = vpop.f32.mrf.mxu0
    %v231 = vadd.f32 0.0, %v230
    %232 = vmatmul.f32.gmra.mxu0 %v117
    %v233 = vpop.f32.mrf.mxu0
    %v234 = vadd.f32 0.0, %v233
    %235 = vmatmul.f32.gmra.mxu0 %v120
    %v236 = vpop.f32.mrf.mxu0
    %v237 = vadd.f32 0.0, %v236
    %238 = vmatmul.f32.gmra.mxu0 %v123
    %v239 = vpop.f32.mrf.mxu0
    %v240 = vadd.f32 0.0, %v239
    %241 = vmatmul.f32.gmra.mxu0 %v126
    %v242 = vpop.f32.mrf.mxu0
    %v243 = vadd.f32 0.0, %v242
    %244 = vmatmul.f32.gmra.mxu0 %v129
    %v245 = vpop.f32.mrf.mxu0
    %v246 = vadd.f32 0.0, %v245
    %247 = vmatmul.f32.gmra.mxu0 %v132
    %v248 = vpop.f32.mrf.mxu0
    %v249 = vadd.f32 0.0, %v248
    %250 = vmatmul.f32.gmra.mxu0 %v135
    %v251 = vpop.f32.mrf.mxu0
    %v252 = vadd.f32 0.0, %v251
    %253 = vmatmul.f32.gmra.mxu0 %v138
    %v254 = vpop.f32.mrf.mxu0
    %v255 = vadd.f32 0.0, %v254
    %256 = vmatmul.f32.gmra.mxu0 %v141
    %v257 = vpop.f32.mrf.mxu0
    %v258 = vadd.f32 0.0, %v257
    %259 = vdwg.mxu0
    %v260 = vadd.f32 %v165, %v165
    %v261 = vadd.f32 %v168, %v168
    %v262 = vadd.f32 %v171, %v171
    %v263 = vadd.f32 %v174, %v174
    %v264 = vadd.f32 %v177, %v177
    %v265 = vadd.f32 %v180, %v180
    %v266 = vadd.f32 %v183, %v183
    %v267 = vadd.f32 %v186, %v186
    %v268 = vadd.f32 %v189, %v189
    %v269 = vadd.f32 %v192, %v192
    %v270 = vadd.f32 %v195, %v195
    %v271 = vadd.f32 %v198, %v198
    %v272 = vadd.f32 %v201, %v201
    %v273 = vadd.f32 %v204, %v204
    %v274 = vadd.f32 %v207, %v207
    %v275 = vadd.f32 %v210, %v210
    %v276 = vadd.f32 %v213, %v213
    %v277 = vadd.f32 %v216, %v216
    %v278 = vadd.f32 %v219, %v219
    %v279 = vadd.f32 %v222, %v222
    %v280 = vadd.f32 %v225, %v225
    %v281 = vadd.f32 %v228, %v228
    %v282 = vadd.f32 %v231, %v231
    %v283 = vadd.f32 %v234, %v234
    %v284 = vadd.f32 %v237, %v237
    %v285 = vadd.f32 %v240, %v240
    %v286 = vadd.f32 %v243, %v243
    %v287 = vadd.f32 %v246, %v246
    %v288 = vadd.f32 %v249, %v249
    %v289 = vadd.f32 %v252, %v252
    %v290 = vadd.f32 %v255, %v255
    %v291 = vadd.f32 %v258, %v258
    %v292 = vadd.f32 %v260, 0.5
    %v293 = vadd.f32 %v261, 0.5
    %v294 = vadd.f32 %v262, 0.5
    %v295 = vadd.f32 %v263, 0.5
    %v296 = vadd.f32 %v264, 0.5
    %v297 = vadd.f32 %v265, 0.5
    %v298 = vadd.f32 %v266, 0.5
    %v299 = vadd.f32 %v267, 0.5
    %v300 = vadd.f32 %v268, 0.5
    %v301 = vadd.f32 %v269, 0.5
    %v302 = vadd.f32 %v270, 0.5
    %v303 = vadd.f32 %v271, 0.5
    %v304 = vadd.f32 %v272, 0.5
    %v305 = vadd.f32 %v273, 0.5
    %v306 = vadd.f32 %v274, 0.5
    %v307 = vadd.f32 %v275, 0.5
    %v308 = vadd.f32 %v276, 0.5
    %v309 = vadd.f32 %v277, 0.5
    %v310 = vadd.f32 %v278, 0.5
    %v311 = vadd.f32 %v279, 0.5
    %v312 = vadd.f32 %v280, 0.5
    %v313 = vadd.f32 %v281, 0.5
    %v314 = vadd.f32 %v282, 0.5
    %v315 = vadd.f32 %v283, 0.5
    %v316 = vadd.f32 %v284, 0.5
    %v317 = vadd.f32 %v285, 0.5
    %v318 = vadd.f32 %v286, 0.5
    %v319 = vadd.f32 %v287, 0.5
    %v320 = vadd.f32 %v288, 0.5
    %v321 = vadd.f32 %v289, 0.5
    %v322 = vadd.f32 %v290, 0.5
    %v323 = vadd.f32 %v291, 0.5
    %v324 = vfloor.f32 %v292
    %v325 = vfloor.f32 %v293
    %v326 = vfloor.f32 %v294
    %v327 = vfloor.f32 %v295
    %v328 = vfloor.f32 %v296
    %v329 = vfloor.f32 %v297
    %v330 = vfloor.f32 %v298
    %v331 = vfloor.f32 %v299
    %v332 = vfloor.f32 %v300
    %v333 = vfloor.f32 %v301
    %v334 = vfloor.f32 %v302
    %v335 = vfloor.f32 %v303
    %v336 = vfloor.f32 %v304
    %v337 = vfloor.f32 %v305
    %v338 = vfloor.f32 %v306
    %v339 = vfloor.f32 %v307
    %v340 = vfloor.f32 %v308
    %v341 = vfloor.f32 %v309
    %v342 = vfloor.f32 %v310
    %v343 = vfloor.f32 %v311
    %v344 = vfloor.f32 %v312
    %v345 = vfloor.f32 %v313
    %v346 = vfloor.f32 %v314
    %v347 = vfloor.f32 %v315
    %v348 = vfloor.f32 %v316
    %v349 = vfloor.f32 %v317
    %v350 = vfloor.f32 %v318
    %v351 = vfloor.f32 %v319
    %v352 = vfloor.f32 %v320
    %v353 = vfloor.f32 %v321
    %v354 = vfloor.f32 %v322
    %v355 = vfloor.f32 %v323
    %v356 = vmul.f32 %v324, 0.5
    %v357 = vmul.f32 %v325, 0.5
    %v358 = vmul.f32 %v326, 0.5
    %v359 = vmul.f32 %v327, 0.5
    %v360 = vmul.f32 %v328, 0.5
    %v361 = vmul.f32 %v329, 0.5
    %v362 = vmul.f32 %v330, 0.5
    %v363 = vmul.f32 %v331, 0.5
    %v364 = vmul.f32 %v332, 0.5
    %v365 = vmul.f32 %v333, 0.5
    %v366 = vmul.f32 %v334, 0.5
    %v367 = vmul.f32 %v335, 0.5
    %v368 = vmul.f32 %v336, 0.5
    %v369 = vmul.f32 %v337, 0.5
    %v370 = vmul.f32 %v338, 0.5
    %v371 = vmul.f32 %v339, 0.5
    %v372 = vmul.f32 %v340, 0.5
    %v373 = vmul.f32 %v341, 0.5
    %v374 = vmul.f32 %v342, 0.5
    %v375 = vmul.f32 %v343, 0.5
    %v376 = vmul.f32 %v344, 0.5
    %v377 = vmul.f32 %v345, 0.5
    %v378 = vmul.f32 %v346, 0.5
    %v379 = vmul.f32 %v347, 0.5
    %v380 = vmul.f32 %v348, 0.5
    %v381 = vmul.f32 %v349, 0.5
    %v382 = vmul.f32 %v350, 0.5
    %v383 = vmul.f32 %v351, 0.5
    %v384 = vmul.f32 %v352, 0.5
    %v385 = vmul.f32 %v353, 0.5
    %v386 = vmul.f32 %v354, 0.5
    %v387 = vmul.f32 %v355, 0.5
    %v388 = vsub.f32 %v165, %v356
    %v389 = vsub.f32 %v168, %v357
    %v390 = vsub.f32 %v171, %v358
    %v391 = vsub.f32 %v174, %v359
    %v392 = vsub.f32 %v177, %v360
    %v393 = vsub.f32 %v180, %v361
    %v394 = vsub.f32 %v183, %v362
    %v395 = vsub.f32 %v186, %v363
    %v396 = vsub.f32 %v189, %v364
    %v397 = vsub.f32 %v192, %v365
    %v398 = vsub.f32 %v195, %v366
    %v399 = vsub.f32 %v198, %v367
    %v400 = vsub.f32 %v201, %v368
    %v401 = vsub.f32 %v204, %v369
    %v402 = vsub.f32 %v207, %v370
    %v403 = vsub.f32 %v210, %v371
    %v404 = vsub.f32 %v213, %v372
    %v405 = vsub.f32 %v216, %v373
    %v406 = vsub.f32 %v219, %v374
    %v407 = vsub.f32 %v222, %v375
    %v408 = vsub.f32 %v225, %v376
    %v409 = vsub.f32 %v228, %v377
    %v410 = vsub.f32 %v231, %v378
    %v411 = vsub.f32 %v234, %v379
    %v412 = vsub.f32 %v237, %v380
    %v413 = vsub.f32 %v240, %v381
    %v414 = vsub.f32 %v243, %v382
    %v415 = vsub.f32 %v246, %v383
    %v416 = vsub.f32 %v249, %v384
    %v417 = vsub.f32 %v252, %v385
    %v418 = vsub.f32 %v255, %v386
    %v419 = vsub.f32 %v258, %v387
    %v420 = vmul.f32 %v388, %v388
    %v421 = vmul.f32 %v389, %v389
    %v422 = vmul.f32 %v390, %v390
    %v423 = vmul.f32 %v391, %v391
    %v424 = vmul.f32 %v392, %v392
    %v425 = vmul.f32 %v393, %v393
    %v426 = vmul.f32 %v394, %v394
    %v427 = vmul.f32 %v395, %v395
    %v428 = vmul.f32 %v396, %v396
    %v429 = vmul.f32 %v397, %v397
    %v430 = vmul.f32 %v398, %v398
    %v431 = vmul.f32 %v399, %v399
    %v432 = vmul.f32 %v400, %v400
    %v433 = vmul.f32 %v401, %v401
    %v434 = vmul.f32 %v402, %v402
    %v435 = vmul.f32 %v403, %v403
    %v436 = vmul.f32 %v404, %v404
    %v437 = vmul.f32 %v405, %v405
    %v438 = vmul.f32 %v406, %v406
    %v439 = vmul.f32 %v407, %v407
    %v440 = vmul.f32 %v408, %v408
    %v441 = vmul.f32 %v409, %v409
    %v442 = vmul.f32 %v410, %v410
    %v443 = vmul.f32 %v411, %v411
    %v444 = vmul.f32 %v412, %v412
    %v445 = vmul.f32 %v413, %v413
    %v446 = vmul.f32 %v414, %v414
    %v447 = vmul.f32 %v415, %v415
    %v448 = vmul.f32 %v416, %v416
    %v449 = vmul.f32 %v417, %v417
    %v450 = vmul.f32 %v418, %v418
    %v451 = vmul.f32 %v419, %v419
    %v452 = vmul.f32 %v420, 42.058693
    %v453 = vmul.f32 %v421, 42.058693
    %v454 = vmul.f32 %v422, 42.058693
    %v455 = vmul.f32 %v423, 42.058693
    %v456 = vmul.f32 %v424, 42.058693
    %v457 = vmul.f32 %v425, 42.058693
    %v458 = vmul.f32 %v426, 42.058693
    %v459 = vmul.f32 %v427, 42.058693
    %v460 = vmul.f32 %v428, 42.058693
    %v461 = vmul.f32 %v429, 42.058693
    %v462 = vmul.f32 %v430, 42.058693
    %v463 = vmul.f32 %v431, 42.058693
    %v464 = vmul.f32 %v432, 42.058693
    %v465 = vmul.f32 %v433, 42.058693
    %v466 = vmul.f32 %v434, 42.058693
    %v467 = vmul.f32 %v435, 42.058693
    %v468 = vmul.f32 %v436, 42.058693
    %v469 = vmul.f32 %v437, 42.058693
    %v470 = vmul.f32 %v438, 42.058693
    %v471 = vmul.f32 %v439, 42.058693
    %v472 = vmul.f32 %v440, 42.058693
    %v473 = vmul.f32 %v441, 42.058693
    %v474 = vmul.f32 %v442, 42.058693
    %v475 = vmul.f32 %v443, 42.058693
    %v476 = vmul.f32 %v444, 42.058693
    %v477 = vmul.f32 %v445, 42.058693
    %v478 = vmul.f32 %v446, 42.058693
    %v479 = vmul.f32 %v447, 42.058693
    %v480 = vmul.f32 %v448, 42.058693
    %v481 = vmul.f32 %v449, 42.058693
    %v482 = vmul.f32 %v450, 42.058693
    %v483 = vmul.f32 %v451, 42.058693
    %v484 = vadd.f32 %v452, -76.70586
    %v485 = vadd.f32 %v453, -76.70586
    %v486 = vadd.f32 %v454, -76.70586
    %v487 = vadd.f32 %v455, -76.70586
    %v488 = vadd.f32 %v456, -76.70586
    %v489 = vadd.f32 %v457, -76.70586
    %v490 = vadd.f32 %v458, -76.70586
    %v491 = vadd.f32 %v459, -76.70586
    %v492 = vadd.f32 %v460, -76.70586
    %v493 = vadd.f32 %v461, -76.70586
    %v494 = vadd.f32 %v462, -76.70586
    %v495 = vadd.f32 %v463, -76.70586
    %v496 = vadd.f32 %v464, -76.70586
    %v497 = vadd.f32 %v465, -76.70586
    %v498 = vadd.f32 %v466, -76.70586
    %v499 = vadd.f32 %v467, -76.70586
    %v500 = vadd.f32 %v468, -76.70586
    %v501 = vadd.f32 %v469, -76.70586
    %v502 = vadd.f32 %v470, -76.70586
    %v503 = vadd.f32 %v471, -76.70586
    %v504 = vadd.f32 %v472, -76.70586
    %v505 = vadd.f32 %v473, -76.70586
    %v506 = vadd.f32 %v474, -76.70586
    %v507 = vadd.f32 %v475, -76.70586
    %v508 = vadd.f32 %v476, -76.70586
    %v509 = vadd.f32 %v477, -76.70586
    %v510 = vadd.f32 %v478, -76.70586
    %v511 = vadd.f32 %v479, -76.70586
    %v512 = vadd.f32 %v480, -76.70586
    %v513 = vadd.f32 %v481, -76.70586
    %v514 = vadd.f32 %v482, -76.70586
    %v515 = vadd.f32 %v483, -76.70586
    %v516 = vmul.f32 %v420, %v484
    %v517 = vmul.f32 %v421, %v485
    %v518 = vmul.f32 %v422, %v486
    %v519 = vmul.f32 %v423, %v487
    %v520 = vmul.f32 %v424, %v488
    %v521 = vmul.f32 %v425, %v489
    %v522 = vmul.f32 %v426, %v490
    %v523 = vmul.f32 %v427, %v491
    %v524 = vmul.f32 %v428, %v492
    %v525 = vmul.f32 %v429, %v493
    %v526 = vmul.f32 %v430, %v494
    %v527 = vmul.f32 %v431, %v495
    %v528 = vmul.f32 %v432, %v496
    %v529 = vmul.f32 %v433, %v497
    %v530 = vmul.f32 %v434, %v498
    %v531 = vmul.f32 %v435, %v499
    %v532 = vmul.f32 %v436, %v500
    %v533 = vmul.f32 %v437, %v501
    %v534 = vmul.f32 %v438, %v502
    %v535 = vmul.f32 %v439, %v503
    %v536 = vmul.f32 %v440, %v504
    %v537 = vmul.f32 %v441, %v505
    %v538 = vmul.f32 %v442, %v506
    %v539 = vmul.f32 %v443, %v507
    %v540 = vmul.f32 %v444, %v508
    %v541 = vmul.f32 %v445, %v509
    %v542 = vmul.f32 %v446, %v510
    %v543 = vmul.f32 %v447, %v511
    %v544 = vmul.f32 %v448, %v512
    %v545 = vmul.f32 %v449, %v513
    %v546 = vmul.f32 %v450, %v514
    %v547 = vmul.f32 %v451, %v515
    %v548 = vadd.f32 %v516, 81.60525
    %v549 = vadd.f32 %v517, 81.60525
    %v550 = vadd.f32 %v518, 81.60525
    %v551 = vadd.f32 %v519, 81.60525
    %v552 = vadd.f32 %v520, 81.60525
    %v553 = vadd.f32 %v521, 81.60525
    %v554 = vadd.f32 %v522, 81.60525
    %v555 = vadd.f32 %v523, 81.60525
    %v556 = vadd.f32 %v524, 81.60525
    %v557 = vadd.f32 %v525, 81.60525
    %v558 = vadd.f32 %v526, 81.60525
    %v559 = vadd.f32 %v527, 81.60525
    %v560 = vadd.f32 %v528, 81.60525
    %v561 = vadd.f32 %v529, 81.60525
    %v562 = vadd.f32 %v530, 81.60525
    %v563 = vadd.f32 %v531, 81.60525
    %v564 = vadd.f32 %v532, 81.60525
    %v565 = vadd.f32 %v533, 81.60525
    %v566 = vadd.f32 %v534, 81.60525
    %v567 = vadd.f32 %v535, 81.60525
    %v568 = vadd.f32 %v536, 81.60525
    %v569 = vadd.f32 %v537, 81.60525
    %v570 = vadd.f32 %v538, 81.60525
    %v571 = vadd.f32 %v539, 81.60525
    %v572 = vadd.f32 %v540, 81.60525
    %v573 = vadd.f32 %v541, 81.60525
    %v574 = vadd.f32 %v542, 81.60525
    %v575 = vadd.f32 %v543, 81.60525
    %v576 = vadd.f32 %v544, 81.60525
    %v577 = vadd.f32 %v545, 81.60525
    %v578 = vadd.f32 %v546, 81.60525
    %v579 = vadd.f32 %v547, 81.60525
    %v580 = vmul.f32 %v420, %v548
    %v581 = vmul.f32 %v421, %v549
    %v582 = vmul.f32 %v422, %v550
    %v583 = vmul.f32 %v423, %v551
    %v584 = vmul.f32 %v424, %v552
    %v585 = vmul.f32 %v425, %v553
    %v586 = vmul.f32 %v426, %v554
    %v587 = vmul.f32 %v427, %v555
    %v588 = vmul.f32 %v428, %v556
    %v589 = vmul.f32 %v429, %v557
    %v590 = vmul.f32 %v430, %v558
    %v591 = vmul.f32 %v431, %v559
    %v592 = vmul.f32 %v432, %v560
    %v593 = vmul.f32 %v433, %v561
    %v594 = vmul.f32 %v434, %v562
    %v595 = vmul.f32 %v435, %v563
    %v596 = vmul.f32 %v436, %v564
    %v597 = vmul.f32 %v437, %v565
    %v598 = vmul.f32 %v438, %v566
    %v599 = vmul.f32 %v439, %v567
    %v600 = vmul.f32 %v440, %v568
    %v601 = vmul.f32 %v441, %v569
    %v602 = vmul.f32 %v442, %v570
    %v603 = vmul.f32 %v443, %v571
    %v604 = vmul.f32 %v444, %v572
    %v605 = vmul.f32 %v445, %v573
    %v606 = vmul.f32 %v446, %v574
    %v607 = vmul.f32 %v447, %v575
    %v608 = vmul.f32 %v448, %v576
    %v609 = vmul.f32 %v449, %v577
    %v610 = vmul.f32 %v450, %v578
    %v611 = vmul.f32 %v451, %v579
    %v612 = vadd.f32 %v580, -41.3417
    %v613 = vadd.f32 %v581, -41.3417
    %v614 = vadd.f32 %v582, -41.3417
    %v615 = vadd.f32 %v583, -41.3417
    %v616 = vadd.f32 %v584, -41.3417
    %v617 = vadd.f32 %v585, -41.3417
    %v618 = vadd.f32 %v586, -41.3417
    %v619 = vadd.f32 %v587, -41.3417
    %v620 = vadd.f32 %v588, -41.3417
    %v621 = vadd.f32 %v589, -41.3417
    %v622 = vadd.f32 %v590, -41.3417
    %v623 = vadd.f32 %v591, -41.3417
    %v624 = vadd.f32 %v592, -41.3417
    %v625 = vadd.f32 %v593, -41.3417
    %v626 = vadd.f32 %v594, -41.3417
    %v627 = vadd.f32 %v595, -41.3417
    %v628 = vadd.f32 %v596, -41.3417
    %v629 = vadd.f32 %v597, -41.3417
    %v630 = vadd.f32 %v598, -41.3417
    %v631 = vadd.f32 %v599, -41.3417
    %v632 = vadd.f32 %v600, -41.3417
    %v633 = vadd.f32 %v601, -41.3417
    %v634 = vadd.f32 %v602, -41.3417
    %v635 = vadd.f32 %v603, -41.3417
    %v636 = vadd.f32 %v604, -41.3417
    %v637 = vadd.f32 %v605, -41.3417
    %v638 = vadd.f32 %v606, -41.3417
    %v639 = vadd.f32 %v607, -41.3417
    %v640 = vadd.f32 %v608, -41.3417
    %v641 = vadd.f32 %v609, -41.3417
    %v642 = vadd.f32 %v610, -41.3417
    %v643 = vadd.f32 %v611, -41.3417
    %v644 = vmul.f32 %v420, %v612
    %v645 = vmul.f32 %v421, %v613
    %v646 = vmul.f32 %v422, %v614
    %v647 = vmul.f32 %v423, %v615
    %v648 = vmul.f32 %v424, %v616
    %v649 = vmul.f32 %v425, %v617
    %v650 = vmul.f32 %v426, %v618
    %v651 = vmul.f32 %v427, %v619
    %v652 = vmul.f32 %v428, %v620
    %v653 = vmul.f32 %v429, %v621
    %v654 = vmul.f32 %v430, %v622
    %v655 = vmul.f32 %v431, %v623
    %v656 = vmul.f32 %v432, %v624
    %v657 = vmul.f32 %v433, %v625
    %v658 = vmul.f32 %v434, %v626
    %v659 = vmul.f32 %v435, %v627
    %v660 = vmul.f32 %v436, %v628
    %v661 = vmul.f32 %v437, %v629
    %v662 = vmul.f32 %v438, %v630
    %v663 = vmul.f32 %v439, %v631
    %v664 = vmul.f32 %v440, %v632
    %v665 = vmul.f32 %v441, %v633
    %v666 = vmul.f32 %v442, %v634
    %v667 = vmul.f32 %v443, %v635
    %v668 = vmul.f32 %v444, %v636
    %v669 = vmul.f32 %v445, %v637
    %v670 = vmul.f32 %v446, %v638
    %v671 = vmul.f32 %v447, %v639
    %v672 = vmul.f32 %v448, %v640
    %v673 = vmul.f32 %v449, %v641
    %v674 = vmul.f32 %v450, %v642
    %v675 = vmul.f32 %v451, %v643
    %v676 = vadd.f32 %v644, 6.2831855
    %v677 = vadd.f32 %v645, 6.2831855
    %v678 = vadd.f32 %v646, 6.2831855
    %v679 = vadd.f32 %v647, 6.2831855
    %v680 = vadd.f32 %v648, 6.2831855
    %v681 = vadd.f32 %v649, 6.2831855
    %v682 = vadd.f32 %v650, 6.2831855
    %v683 = vadd.f32 %v651, 6.2831855
    %v684 = vadd.f32 %v652, 6.2831855
    %v685 = vadd.f32 %v653, 6.2831855
    %v686 = vadd.f32 %v654, 6.2831855
    %v687 = vadd.f32 %v655, 6.2831855
    %v688 = vadd.f32 %v656, 6.2831855
    %v689 = vadd.f32 %v657, 6.2831855
    %v690 = vadd.f32 %v658, 6.2831855
    %v691 = vadd.f32 %v659, 6.2831855
    %v692 = vadd.f32 %v660, 6.2831855
    %v693 = vadd.f32 %v661, 6.2831855
    %v694 = vadd.f32 %v662, 6.2831855
    %v695 = vadd.f32 %v663, 6.2831855
    %v696 = vadd.f32 %v664, 6.2831855
    %v697 = vadd.f32 %v665, 6.2831855
    %v698 = vadd.f32 %v666, 6.2831855
    %v699 = vadd.f32 %v667, 6.2831855
    %v700 = vadd.f32 %v668, 6.2831855
    %v701 = vadd.f32 %v669, 6.2831855
    %v702 = vadd.f32 %v670, 6.2831855
    %v703 = vadd.f32 %v671, 6.2831855
    %v704 = vadd.f32 %v672, 6.2831855
    %v705 = vadd.f32 %v673, 6.2831855
    %v706 = vadd.f32 %v674, 6.2831855
    %v707 = vadd.f32 %v675, 6.2831855
    %v708 = vmul.f32 %v388, %v676
    %v709 = vmul.f32 %v389, %v677
    %v710 = vmul.f32 %v390, %v678
    %v711 = vmul.f32 %v391, %v679
    %v712 = vmul.f32 %v392, %v680
    %v713 = vmul.f32 %v393, %v681
    %v714 = vmul.f32 %v394, %v682
    %v715 = vmul.f32 %v395, %v683
    %v716 = vmul.f32 %v396, %v684
    %v717 = vmul.f32 %v397, %v685
    %v718 = vmul.f32 %v398, %v686
    %v719 = vmul.f32 %v399, %v687
    %v720 = vmul.f32 %v400, %v688
    %v721 = vmul.f32 %v401, %v689
    %v722 = vmul.f32 %v402, %v690
    %v723 = vmul.f32 %v403, %v691
    %v724 = vmul.f32 %v404, %v692
    %v725 = vmul.f32 %v405, %v693
    %v726 = vmul.f32 %v406, %v694
    %v727 = vmul.f32 %v407, %v695
    %v728 = vmul.f32 %v408, %v696
    %v729 = vmul.f32 %v409, %v697
    %v730 = vmul.f32 %v410, %v698
    %v731 = vmul.f32 %v411, %v699
    %v732 = vmul.f32 %v412, %v700
    %v733 = vmul.f32 %v413, %v701
    %v734 = vmul.f32 %v414, %v702
    %v735 = vmul.f32 %v415, %v703
    %v736 = vmul.f32 %v416, %v704
    %v737 = vmul.f32 %v417, %v705
    %v738 = vmul.f32 %v418, %v706
    %v739 = vmul.f32 %v419, %v707
    %v740 = vmul.f32 %v420, 60.24464
    %v741 = vmul.f32 %v421, 60.24464
    %v742 = vmul.f32 %v422, 60.24464
    %v743 = vmul.f32 %v423, 60.24464
    %v744 = vmul.f32 %v424, 60.24464
    %v745 = vmul.f32 %v425, 60.24464
    %v746 = vmul.f32 %v426, 60.24464
    %v747 = vmul.f32 %v427, 60.24464
    %v748 = vmul.f32 %v428, 60.24464
    %v749 = vmul.f32 %v429, 60.24464
    %v750 = vmul.f32 %v430, 60.24464
    %v751 = vmul.f32 %v431, 60.24464
    %v752 = vmul.f32 %v432, 60.24464
    %v753 = vmul.f32 %v433, 60.24464
    %v754 = vmul.f32 %v434, 60.24464
    %v755 = vmul.f32 %v435, 60.24464
    %v756 = vmul.f32 %v436, 60.24464
    %v757 = vmul.f32 %v437, 60.24464
    %v758 = vmul.f32 %v438, 60.24464
    %v759 = vmul.f32 %v439, 60.24464
    %v760 = vmul.f32 %v440, 60.24464
    %v761 = vmul.f32 %v441, 60.24464
    %v762 = vmul.f32 %v442, 60.24464
    %v763 = vmul.f32 %v443, 60.24464
    %v764 = vmul.f32 %v444, 60.24464
    %v765 = vmul.f32 %v445, 60.24464
    %v766 = vmul.f32 %v446, 60.24464
    %v767 = vmul.f32 %v447, 60.24464
    %v768 = vmul.f32 %v448, 60.24464
    %v769 = vmul.f32 %v449, 60.24464
    %v770 = vmul.f32 %v450, 60.24464
    %v771 = vmul.f32 %v451, 60.24464
    %v772 = vadd.f32 %v740, -85.45682
    %v773 = vadd.f32 %v741, -85.45682
    %v774 = vadd.f32 %v742, -85.45682
    %v775 = vadd.f32 %v743, -85.45682
    %v776 = vadd.f32 %v744, -85.45682
    %v777 = vadd.f32 %v745, -85.45682
    %v778 = vadd.f32 %v746, -85.45682
    %v779 = vadd.f32 %v747, -85.45682
    %v780 = vadd.f32 %v748, -85.45682
    %v781 = vadd.f32 %v749, -85.45682
    %v782 = vadd.f32 %v750, -85.45682
    %v783 = vadd.f32 %v751, -85.45682
    %v784 = vadd.f32 %v752, -85.45682
    %v785 = vadd.f32 %v753, -85.45682
    %v786 = vadd.f32 %v754, -85.45682
    %v787 = vadd.f32 %v755, -85.45682
    %v788 = vadd.f32 %v756, -85.45682
    %v789 = vadd.f32 %v757, -85.45682
    %v790 = vadd.f32 %v758, -85.45682
    %v791 = vadd.f32 %v759, -85.45682
    %v792 = vadd.f32 %v760, -85.45682
    %v793 = vadd.f32 %v761, -85.45682
    %v794 = vadd.f32 %v762, -85.45682
    %v795 = vadd.f32 %v763, -85.45682
    %v796 = vadd.f32 %v764, -85.45682
    %v797 = vadd.f32 %v765, -85.45682
    %v798 = vadd.f32 %v766, -85.45682
    %v799 = vadd.f32 %v767, -85.45682
    %v800 = vadd.f32 %v768, -85.45682
    %v801 = vadd.f32 %v769, -85.45682
    %v802 = vadd.f32 %v770, -85.45682
    %v803 = vadd.f32 %v771, -85.45682
    %v804 = vmul.f32 %v420, %v772
    %v805 = vmul.f32 %v421, %v773
    %v806 = vmul.f32 %v422, %v774
    %v807 = vmul.f32 %v423, %v775
    %v808 = vmul.f32 %v424, %v776
    %v809 = vmul.f32 %v425, %v777
    %v810 = vmul.f32 %v426, %v778
    %v811 = vmul.f32 %v427, %v779
    %v812 = vmul.f32 %v428, %v780
    %v813 = vmul.f32 %v429, %v781
    %v814 = vmul.f32 %v430, %v782
    %v815 = vmul.f32 %v431, %v783
    %v816 = vmul.f32 %v432, %v784
    %v817 = vmul.f32 %v433, %v785
    %v818 = vmul.f32 %v434, %v786
    %v819 = vmul.f32 %v435, %v787
    %v820 = vmul.f32 %v436, %v788
    %v821 = vmul.f32 %v437, %v789
    %v822 = vmul.f32 %v438, %v790
    %v823 = vmul.f32 %v439, %v791
    %v824 = vmul.f32 %v440, %v792
    %v825 = vmul.f32 %v441, %v793
    %v826 = vmul.f32 %v442, %v794
    %v827 = vmul.f32 %v443, %v795
    %v828 = vmul.f32 %v444, %v796
    %v829 = vmul.f32 %v445, %v797
    %v830 = vmul.f32 %v446, %v798
    %v831 = vmul.f32 %v447, %v799
    %v832 = vmul.f32 %v448, %v800
    %v833 = vmul.f32 %v449, %v801
    %v834 = vmul.f32 %v450, %v802
    %v835 = vmul.f32 %v451, %v803
    %v836 = vadd.f32 %v804, 64.93939
    %v837 = vadd.f32 %v805, 64.93939
    %v838 = vadd.f32 %v806, 64.93939
    %v839 = vadd.f32 %v807, 64.93939
    %v840 = vadd.f32 %v808, 64.93939
    %v841 = vadd.f32 %v809, 64.93939
    %v842 = vadd.f32 %v810, 64.93939
    %v843 = vadd.f32 %v811, 64.93939
    %v844 = vadd.f32 %v812, 64.93939
    %v845 = vadd.f32 %v813, 64.93939
    %v846 = vadd.f32 %v814, 64.93939
    %v847 = vadd.f32 %v815, 64.93939
    %v848 = vadd.f32 %v816, 64.93939
    %v849 = vadd.f32 %v817, 64.93939
    %v850 = vadd.f32 %v818, 64.93939
    %v851 = vadd.f32 %v819, 64.93939
    %v852 = vadd.f32 %v820, 64.93939
    %v853 = vadd.f32 %v821, 64.93939
    %v854 = vadd.f32 %v822, 64.93939
    %v855 = vadd.f32 %v823, 64.93939
    %v856 = vadd.f32 %v824, 64.93939
    %v857 = vadd.f32 %v825, 64.93939
    %v858 = vadd.f32 %v826, 64.93939
    %v859 = vadd.f32 %v827, 64.93939
    %v860 = vadd.f32 %v828, 64.93939
    %v861 = vadd.f32 %v829, 64.93939
    %v862 = vadd.f32 %v830, 64.93939
    %v863 = vadd.f32 %v831, 64.93939
    %v864 = vadd.f32 %v832, 64.93939
    %v865 = vadd.f32 %v833, 64.93939
    %v866 = vadd.f32 %v834, 64.93939
    %v867 = vadd.f32 %v835, 64.93939
    %v868 = vmul.f32 %v420, %v836
    %v869 = vmul.f32 %v421, %v837
    %v870 = vmul.f32 %v422, %v838
    %v871 = vmul.f32 %v423, %v839
    %v872 = vmul.f32 %v424, %v840
    %v873 = vmul.f32 %v425, %v841
    %v874 = vmul.f32 %v426, %v842
    %v875 = vmul.f32 %v427, %v843
    %v876 = vmul.f32 %v428, %v844
    %v877 = vmul.f32 %v429, %v845
    %v878 = vmul.f32 %v430, %v846
    %v879 = vmul.f32 %v431, %v847
    %v880 = vmul.f32 %v432, %v848
    %v881 = vmul.f32 %v433, %v849
    %v882 = vmul.f32 %v434, %v850
    %v883 = vmul.f32 %v435, %v851
    %v884 = vmul.f32 %v436, %v852
    %v885 = vmul.f32 %v437, %v853
    %v886 = vmul.f32 %v438, %v854
    %v887 = vmul.f32 %v439, %v855
    %v888 = vmul.f32 %v440, %v856
    %v889 = vmul.f32 %v441, %v857
    %v890 = vmul.f32 %v442, %v858
    %v891 = vmul.f32 %v443, %v859
    %v892 = vmul.f32 %v444, %v860
    %v893 = vmul.f32 %v445, %v861
    %v894 = vmul.f32 %v446, %v862
    %v895 = vmul.f32 %v447, %v863
    %v896 = vmul.f32 %v448, %v864
    %v897 = vmul.f32 %v449, %v865
    %v898 = vmul.f32 %v450, %v866
    %v899 = vmul.f32 %v451, %v867
    %v900 = vadd.f32 %v868, -19.739208
    %v901 = vadd.f32 %v869, -19.739208
    %v902 = vadd.f32 %v870, -19.739208
    %v903 = vadd.f32 %v871, -19.739208
    %v904 = vadd.f32 %v872, -19.739208
    %v905 = vadd.f32 %v873, -19.739208
    %v906 = vadd.f32 %v874, -19.739208
    %v907 = vadd.f32 %v875, -19.739208
    %v908 = vadd.f32 %v876, -19.739208
    %v909 = vadd.f32 %v877, -19.739208
    %v910 = vadd.f32 %v878, -19.739208
    %v911 = vadd.f32 %v879, -19.739208
    %v912 = vadd.f32 %v880, -19.739208
    %v913 = vadd.f32 %v881, -19.739208
    %v914 = vadd.f32 %v882, -19.739208
    %v915 = vadd.f32 %v883, -19.739208
    %v916 = vadd.f32 %v884, -19.739208
    %v917 = vadd.f32 %v885, -19.739208
    %v918 = vadd.f32 %v886, -19.739208
    %v919 = vadd.f32 %v887, -19.739208
    %v920 = vadd.f32 %v888, -19.739208
    %v921 = vadd.f32 %v889, -19.739208
    %v922 = vadd.f32 %v890, -19.739208
    %v923 = vadd.f32 %v891, -19.739208
    %v924 = vadd.f32 %v892, -19.739208
    %v925 = vadd.f32 %v893, -19.739208
    %v926 = vadd.f32 %v894, -19.739208
    %v927 = vadd.f32 %v895, -19.739208
    %v928 = vadd.f32 %v896, -19.739208
    %v929 = vadd.f32 %v897, -19.739208
    %v930 = vadd.f32 %v898, -19.739208
    %v931 = vadd.f32 %v899, -19.739208
    %v932 = vmul.f32 %v420, %v900
    %v933 = vmul.f32 %v421, %v901
    %v934 = vmul.f32 %v422, %v902
    %v935 = vmul.f32 %v423, %v903
    %v936 = vmul.f32 %v424, %v904
    %v937 = vmul.f32 %v425, %v905
    %v938 = vmul.f32 %v426, %v906
    %v939 = vmul.f32 %v427, %v907
    %v940 = vmul.f32 %v428, %v908
    %v941 = vmul.f32 %v429, %v909
    %v942 = vmul.f32 %v430, %v910
    %v943 = vmul.f32 %v431, %v911
    %v944 = vmul.f32 %v432, %v912
    %v945 = vmul.f32 %v433, %v913
    %v946 = vmul.f32 %v434, %v914
    %v947 = vmul.f32 %v435, %v915
    %v948 = vmul.f32 %v436, %v916
    %v949 = vmul.f32 %v437, %v917
    %v950 = vmul.f32 %v438, %v918
    %v951 = vmul.f32 %v439, %v919
    %v952 = vmul.f32 %v440, %v920
    %v953 = vmul.f32 %v441, %v921
    %v954 = vmul.f32 %v442, %v922
    %v955 = vmul.f32 %v443, %v923
    %v956 = vmul.f32 %v444, %v924
    %v957 = vmul.f32 %v445, %v925
    %v958 = vmul.f32 %v446, %v926
    %v959 = vmul.f32 %v447, %v927
    %v960 = vmul.f32 %v448, %v928
    %v961 = vmul.f32 %v449, %v929
    %v962 = vmul.f32 %v450, %v930
    %v963 = vmul.f32 %v451, %v931
    %v964 = vadd.f32 %v932, 1.0
    %v965 = vadd.f32 %v933, 1.0
    %v966 = vadd.f32 %v934, 1.0
    %v967 = vadd.f32 %v935, 1.0
    %v968 = vadd.f32 %v936, 1.0
    %v969 = vadd.f32 %v937, 1.0
    %v970 = vadd.f32 %v938, 1.0
    %v971 = vadd.f32 %v939, 1.0
    %v972 = vadd.f32 %v940, 1.0
    %v973 = vadd.f32 %v941, 1.0
    %v974 = vadd.f32 %v942, 1.0
    %v975 = vadd.f32 %v943, 1.0
    %v976 = vadd.f32 %v944, 1.0
    %v977 = vadd.f32 %v945, 1.0
    %v978 = vadd.f32 %v946, 1.0
    %v979 = vadd.f32 %v947, 1.0
    %v980 = vadd.f32 %v948, 1.0
    %v981 = vadd.f32 %v949, 1.0
    %v982 = vadd.f32 %v950, 1.0
    %v983 = vadd.f32 %v951, 1.0
    %v984 = vadd.f32 %v952, 1.0
    %v985 = vadd.f32 %v953, 1.0
    %v986 = vadd.f32 %v954, 1.0
    %v987 = vadd.f32 %v955, 1.0
    %v988 = vadd.f32 %v956, 1.0
    %v989 = vadd.f32 %v957, 1.0
    %v990 = vadd.f32 %v958, 1.0
    %v991 = vadd.f32 %v959, 1.0
    %v992 = vadd.f32 %v960, 1.0
    %v993 = vadd.f32 %v961, 1.0
    %v994 = vadd.f32 %v962, 1.0
    %v995 = vadd.f32 %v963, 1.0
    %v996 = vcvt.f32.s32.to.zero.pseudo %v324
    %v997 = vcvt.f32.s32.to.zero.pseudo %v325
    %v998 = vcvt.f32.s32.to.zero.pseudo %v326
    %v999 = vcvt.f32.s32.to.zero.pseudo %v327
    %v1000 = vcvt.f32.s32.to.zero.pseudo %v328
    %v1001 = vcvt.f32.s32.to.zero.pseudo %v329
    %v1002 = vcvt.f32.s32.to.zero.pseudo %v330
    %v1003 = vcvt.f32.s32.to.zero.pseudo %v331
    %v1004 = vcvt.f32.s32.to.zero.pseudo %v332
    %v1005 = vcvt.f32.s32.to.zero.pseudo %v333
    %v1006 = vcvt.f32.s32.to.zero.pseudo %v334
    %v1007 = vcvt.f32.s32.to.zero.pseudo %v335
    %v1008 = vcvt.f32.s32.to.zero.pseudo %v336
    %v1009 = vcvt.f32.s32.to.zero.pseudo %v337
    %v1010 = vcvt.f32.s32.to.zero.pseudo %v338
    %v1011 = vcvt.f32.s32.to.zero.pseudo %v339
    %v1012 = vcvt.f32.s32.to.zero.pseudo %v340
    %v1013 = vcvt.f32.s32.to.zero.pseudo %v341
    %v1014 = vcvt.f32.s32.to.zero.pseudo %v342
    %v1015 = vcvt.f32.s32.to.zero.pseudo %v343
    %v1016 = vcvt.f32.s32.to.zero.pseudo %v344
    %v1017 = vcvt.f32.s32.to.zero.pseudo %v345
    %v1018 = vcvt.f32.s32.to.zero.pseudo %v346
    %v1019 = vcvt.f32.s32.to.zero.pseudo %v347
    %v1020 = vcvt.f32.s32.to.zero.pseudo %v348
    %v1021 = vcvt.f32.s32.to.zero.pseudo %v349
    %v1022 = vcvt.f32.s32.to.zero.pseudo %v350
    %v1023 = vcvt.f32.s32.to.zero.pseudo %v351
    %v1024 = vcvt.f32.s32.to.zero.pseudo %v352
    %v1025 = vcvt.f32.s32.to.zero.pseudo %v353
    %v1026 = vcvt.f32.s32.to.zero.pseudo %v354
    %v1027 = vcvt.f32.s32.to.zero.pseudo %v355
    %v1028 = vshll.u32 %v996, 31
    %v1029 = vshll.u32 %v997, 31
    %v1030 = vshll.u32 %v998, 31
    %v1031 = vshll.u32 %v999, 31
    %v1032 = vshll.u32 %v1000, 31
    %v1033 = vshll.u32 %v1001, 31
    %v1034 = vshll.u32 %v1002, 31
    %v1035 = vshll.u32 %v1003, 31
    %v1036 = vshll.u32 %v1004, 31
    %v1037 = vshll.u32 %v1005, 31
    %v1038 = vshll.u32 %v1006, 31
    %v1039 = vshll.u32 %v1007, 31
    %v1040 = vshll.u32 %v1008, 31
    %v1041 = vshll.u32 %v1009, 31
    %v1042 = vshll.u32 %v1010, 31
    %v1043 = vshll.u32 %v1011, 31
    %v1044 = vshll.u32 %v1012, 31
    %v1045 = vshll.u32 %v1013, 31
    %v1046 = vshll.u32 %v1014, 31
    %v1047 = vshll.u32 %v1015, 31
    %v1048 = vshll.u32 %v1016, 31
    %v1049 = vshll.u32 %v1017, 31
    %v1050 = vshll.u32 %v1018, 31
    %v1051 = vshll.u32 %v1019, 31
    %v1052 = vshll.u32 %v1020, 31
    %v1053 = vshll.u32 %v1021, 31
    %v1054 = vshll.u32 %v1022, 31
    %v1055 = vshll.u32 %v1023, 31
    %v1056 = vshll.u32 %v1024, 31
    %v1057 = vshll.u32 %v1025, 31
    %v1058 = vshll.u32 %v1026, 31
    %v1059 = vshll.u32 %v1027, 31
    %v1092 = vxor.u32 %v964, %v1028
    %v1093 = vxor.u32 %v965, %v1029
    %v1094 = vxor.u32 %v966, %v1030
    %v1095 = vxor.u32 %v967, %v1031
    %v1096 = vxor.u32 %v968, %v1032
    %v1097 = vxor.u32 %v969, %v1033
    %v1098 = vxor.u32 %v970, %v1034
    %v1099 = vxor.u32 %v971, %v1035
    %v1100 = vxor.u32 %v972, %v1036
    %v1101 = vxor.u32 %v973, %v1037
    %v1102 = vxor.u32 %v974, %v1038
    %v1103 = vxor.u32 %v975, %v1039
    %v1104 = vxor.u32 %v976, %v1040
    %v1105 = vxor.u32 %v977, %v1041
    %v1106 = vxor.u32 %v978, %v1042
    %v1107 = vxor.u32 %v979, %v1043
    %v1108 = vxor.u32 %v980, %v1044
    %v1109 = vxor.u32 %v981, %v1045
    %v1110 = vxor.u32 %v982, %v1046
    %v1111 = vxor.u32 %v983, %v1047
    %v1112 = vxor.u32 %v984, %v1048
    %v1113 = vxor.u32 %v985, %v1049
    %v1114 = vxor.u32 %v986, %v1050
    %v1115 = vxor.u32 %v987, %v1051
    %v1116 = vxor.u32 %v988, %v1052
    %v1117 = vxor.u32 %v989, %v1053
    %v1118 = vxor.u32 %v990, %v1054
    %v1119 = vxor.u32 %v991, %v1055
    %v1120 = vxor.u32 %v992, %v1056
    %v1121 = vxor.u32 %v993, %v1057
    %v1122 = vxor.u32 %v994, %v1058
    %v1123 = vxor.u32 %v995, %v1059
    %v1188 = vxor.u32 %v708, %v1028
    %v1189 = vxor.u32 %v709, %v1029
    %v1190 = vxor.u32 %v710, %v1030
    %v1191 = vxor.u32 %v711, %v1031
    %v1192 = vxor.u32 %v712, %v1032
    %v1193 = vxor.u32 %v713, %v1033
    %v1194 = vxor.u32 %v714, %v1034
    %v1195 = vxor.u32 %v715, %v1035
    %v1196 = vxor.u32 %v716, %v1036
    %v1197 = vxor.u32 %v717, %v1037
    %v1198 = vxor.u32 %v718, %v1038
    %v1199 = vxor.u32 %v719, %v1039
    %v1200 = vxor.u32 %v720, %v1040
    %v1201 = vxor.u32 %v721, %v1041
    %v1202 = vxor.u32 %v722, %v1042
    %v1203 = vxor.u32 %v723, %v1043
    %v1204 = vxor.u32 %v724, %v1044
    %v1205 = vxor.u32 %v725, %v1045
    %v1206 = vxor.u32 %v726, %v1046
    %v1207 = vxor.u32 %v727, %v1047
    %v1208 = vxor.u32 %v728, %v1048
    %v1209 = vxor.u32 %v729, %v1049
    %v1210 = vxor.u32 %v730, %v1050
    %v1211 = vxor.u32 %v731, %v1051
    %v1212 = vxor.u32 %v732, %v1052
    %v1213 = vxor.u32 %v733, %v1053
    %v1214 = vxor.u32 %v734, %v1054
    %v1215 = vxor.u32 %v735, %v1055
    %v1216 = vxor.u32 %v736, %v1056
    %v1217 = vxor.u32 %v737, %v1057
    %v1218 = vxor.u32 %v738, %v1058
    %v1219 = vxor.u32 %v739, %v1059
    %1252 = vst [vmem:[#allocation2] sm:$0xff] %v1092
    %1253 = vst [vmem:[#allocation2 + $0x10] sm:$0xff] %v1093
    %1254 = vst [vmem:[#allocation2 + $0x20] sm:$0xff] %v1094
    %1255 = vst [vmem:[#allocation2 + $0x30] sm:$0xff] %v1095
    %1256 = vst [vmem:[#allocation2 + $0x40] sm:$0xff] %v1096
    %1257 = vst [vmem:[#allocation2 + $0x50] sm:$0xff] %v1097
    %1258 = vst [vmem:[#allocation2 + $0x60] sm:$0xff] %v1098
    %1259 = vst [vmem:[#allocation2 + $0x70] sm:$0xff] %v1099
    %1260 = vst [vmem:[#allocation2 + $0x80] sm:$0xff] %v1100
    %1261 = vst [vmem:[#allocation2 + $0x90] sm:$0xff] %v1101
    %1262 = vst [vmem:[#allocation2 + $0xa0] sm:$0xff] %v1102
    %1263 = vst [vmem:[#allocation2 + $0xb0] sm:$0xff] %v1103
    %1264 = vst [vmem:[#allocation2 + $0xc0] sm:$0xff] %v1104
    %1265 = vst [vmem:[#allocation2 + $0xd0] sm:$0xff] %v1105
    %1266 = vst [vmem:[#allocation2 + $0xe0] sm:$0xff] %v1106
    %1267 = vst [vmem:[#allocation2 + $0xf0] sm:$0xff] %v1107
    %1268 = vst [vmem:[#allocation2 + $0x100] sm:$0xff] %v1108
    %1269 = vst [vmem:[#allocation2 + $0x110] sm:$0xff] %v1109
    %1270 = vst [vmem:[#allocation2 + $0x120] sm:$0xff] %v1110
    %1271 = vst [vmem:[#allocation2 + $0x130] sm:$0xff] %v1111
    %1272 = vst [vmem:[#allocation2 + $0x140] sm:$0xff] %v1112
    %1273 = vst [vmem:[#allocation2 + $0x150] sm:$0xff] %v1113
    %1274 = vst [vmem:[#allocation2 + $0x160] sm:$0xff] %v1114
    %1275 = vst [vmem:[#allocation2 + $0x170] sm:$0xff] %v1115
    %1276 = vst [vmem:[#allocation2 + $0x180] sm:$0xff] %v1116
    %1277 = vst [vmem:[#allocation2 + $0x190] sm:$0xff] %v1117
    %1278 = vst [vmem:[#allocation2 + $0x1a0] sm:$0xff] %v1118
    %1279 = vst [vmem:[#allocation2 + $0x1b0] sm:$0xff] %v1119
    %1280 = vst [vmem:[#allocation2 + $0x1c0] sm:$0xff] %v1120
    %1281 = vst [vmem:[#allocation2 + $0x1d0] sm:$0xff] %v1121
    %1282 = vst [vmem:[#allocation2 + $0x1e0] sm:$0xff] %v1122
    %1283 = vst [vmem:[#allocation2 + $0x1f0] sm:$0xff] %v1123
    %1284 = vst [vmem:[#allocation2 + $0x8] sm:$0xff] %v1188
    %1285 = vst [vmem:[#allocation2 + $0x18] sm:$0xff] %v1189
    %1286 = vst [vmem:[#allocation2 + $0x28] sm:$0xff] %v1190
    %1287 = vst [vmem:[#allocation2 + $0x38] sm:$0xff] %v1191
    %1288 = vst [vmem:[#allocation2 + $0x48] sm:$0xff] %v1192
    %1289 = vst [vmem:[#allocation2 + $0x58] sm:$0xff] %v1193
    %1290 = vst [vmem:[#allocation2 + $0x68] sm:$0xff] %v1194
    %1291 = vst [vmem:[#allocation2 + $0x78] sm:$0xff] %v1195
    %1292 = vst [vmem:[#allocation2 + $0x88] sm:$0xff] %v1196
    %1293 = vst [vmem:[#allocation2 + $0x98] sm:$0xff] %v1197
    %1294 = vst [vmem:[#allocation2 + $0xa8] sm:$0xff] %v1198
    %1295 = vst [vmem:[#allocation2 + $0xb8] sm:$0xff] %v1199
    %1296 = vst [vmem:[#allocation2 + $0xc8] sm:$0xff] %v1200
    %1297 = vst [vmem:[#allocation2 + $0xd8] sm:$0xff] %v1201
    %1298 = vst [vmem:[#allocation2 + $0xe8] sm:$0xff] %v1202
    %1299 = vst [vmem:[#allocation2 + $0xf8] sm:$0xff] %v1203
    %1300 = vst [vmem:[#allocation2 + $0x108] sm:$0xff] %v1204
    %1301 = vst [vmem:[#allocation2 + $0x118] sm:$0xff] %v1205
    %1302 = vst [vmem:[#allocation2 + $0x128] sm:$0xff] %v1206
    %1303 = vst [vmem:[#allocation2 + $0x138] sm:$0xff] %v1207
    %1304 = vst [vmem:[#allocation2 + $0x148] sm:$0xff] %v1208
    %1305 = vst [vmem:[#allocation2 + $0x158] sm:$0xff] %v1209
    %1306 = vst [vmem:[#allocation2 + $0x168] sm:$0xff] %v1210
    %1307 = vst [vmem:[#allocation2 + $0x178] sm:$0xff] %v1211
    %1308 = vst [vmem:[#allocation2 + $0x188] sm:$0xff] %v1212
    %1309 = vst [vmem:[#allocation2 + $0x198] sm:$0xff] %v1213
    %1310 = vst [vmem:[#allocation2 + $0x1a8] sm:$0xff] %v1214
    %1311 = vst [vmem:[#allocation2 + $0x1b8] sm:$0xff] %v1215
    %1312 = vst [vmem:[#allocation2 + $0x1c8] sm:$0xff] %v1216
    %1313 = vst [vmem:[#allocation2 + $0x1d8] sm:$0xff] %v1217
    %1314 = vst [vmem:[#allocation2 + $0x1e8] sm:$0xff] %v1218
    %1315 = vst [vmem:[#allocation2 + $0x1f8] sm:$0xff] %v1219
    // Predicated region
    $region10: #{tpu_custom_call.1} parent=1 // pred_check
      _
    $region11: #{tpu_custom_call.1} parent=1 // pred_check_branch
      %1317 = sbr.rel (0) target = $region13
    $region12: #{tpu_custom_call.1} parent=1 // pred_region
      %1319 = vsyncadd [#allocation3], 0
      %s1320 = sshll.u32 [#allocation2], 4
      %s1321 = int_to_ptr.vmem [resolvable:$true] %s1320
      %s1322 = sshll.u32 %s2, 4
      %s1323 = int_to_ptr.hbm [resolvable:$true] %s1322
      %1328 = dma.vmem_to_hbm [thread:$0]  %s1321, 8192, %s1323, [#allocation3], 256, 256, 16
    $region13: #{tpu_custom_call.1} parent=1 // pred_fallthru
      _
    // Predicated region
    $region14: #{tpu_custom_call.1} parent=1 // pred_check
      _
    $region15: #{tpu_custom_call.1} parent=1 // pred_check_branch
      %1330 = sbr.rel (0) target = $region17
    $region16: #{tpu_custom_call.1} parent=1 // pred_region
      %1332 = dma.done [#allocation3], 8192
    $region17: #{tpu_custom_call.1} parent=1 // pred_fallthru
      _
    %1333 = vsyncpa [#allocation3], 1

</llo_original>
